<compile_context>
chip_gen: v6e
topology: v6e:2x2x1
jax: 0.10.0
libtpu: 0.0.40
codegen_flags: <defaults>
</compile_context>

<pallas_src>
import jax
import jax.numpy as jnp
from jax.experimental import pallas as pl
from jax.experimental.pallas import tpu as pltpu


def _epa_kernel(x_ref, w1_ref, w2_ref, o_ref):
    # x_ref:  (C, tHW)  one batch element's tile of pixels (pixels on lanes)
    # w1_ref: (C, C)    conv1 weight W1[o, i]  ->  h = W1 @ x
    # w2_ref: (C, C)    conv2 weight W2[o, i]  ->  s = W2 @ relu(h)
    x = x_ref[...]

    # conv1 (1x1) -> relu   (f32 accumulation on the MXU)
    h = jnp.dot(w1_ref[...], x, preferred_element_type=jnp.float32)
    h = jnp.maximum(h, 0.0)

    # conv2 (1x1) -> sigmoid (exp on the EUP slot; essentially free vs. MXU/VPU)
    s = jnp.dot(w2_ref[...], h.astype(w2_ref.dtype),
                preferred_element_type=jnp.float32)
    s = jax.nn.sigmoid(s)

    # elementwise gate (f32), cast back to output dtype
    o_ref[...] = (x.astype(jnp.float32) * s).astype(o_ref.dtype)


def _pick_hw_tile(hw, channels, dtype_bytes,
                  vmem_budget_bytes=12 * 1024 * 1024):
    """Largest lane tile whose double-buffered blocks fit the VMEM budget.

    Per grid step the pipeliner holds:
      2 (in + out) * 2 (double buffer) * C * tHW * dtype_bytes   (pixel tiles)
    + 2 (weights)  * 2 (double buffer) * C * C   * dtype_bytes   (constant tiles)
    A 12 MiB budget stays under v5e's 16 MiB scoped default and leaves ample
    headroom on v6e (32/128 MiB) and v7x (32/64 MiB).
    """
    weight_bytes = 4 * channels * channels * dtype_bytes
    budget = max(vmem_budget_bytes - weight_bytes, 4 * 128 * channels * dtype_bytes)
    max_t = budget // (4 * max(channels, 1) * dtype_bytes)
    max_t = max(128, min(int(max_t), 8192))
    if hw <= max_t:
        return hw                      # full array dim: always a legal block
    return (max_t // 128) * 128        # multiple of 128 -> legal, lane-dense


def efficient_pixel_attention(x_nchw, w1, w2):
    """x_nchw: (N, C, H, W).  w1, w2: (C, C, 1, 1) conv weights (no bias)."""
    N, C, H, W = x_nchw.shape
    HW = H * W

    # Free reshape (H, W contiguous) -- no transpose, no extra HBM pass.
    x3 = x_nchw.reshape(N, C, HW)

    # PyTorch conv1x1: y[o] = sum_i W[o, i] * x[i]  =>  y = W @ x  (no transpose)
    w1m = w1[:, :, 0, 0].astype(x_nchw.dtype)   # (C, C)
    w2m = w2[:, :, 0, 0].astype(x_nchw.dtype)   # (C, C)

    dtype_bytes = jnp.dtype(x_nchw.dtype).itemsize
    thw = _pick_hw_tile(HW, C, dtype_bytes)
    n_hw_tiles = pl.cdiv(HW, thw)   # ragged tail handled by masked last block

    # TODO(synk): for very large C (>= ~1024) the two resident (C, C) weight
    # tiles should be K-tiled with a VMEM accumulator; unnecessary here.
    out3 = pl.pallas_call(
        _epa_kernel,
        out_shape=jax.ShapeDtypeStruct((N, C, HW), x_nchw.dtype),
        grid_spec=pltpu.PrefetchScalarGridSpec(
            num_scalar_prefetch=0,
            grid=(N, n_hw_tiles),
            in_specs=[
                # batch dim squeezed (None) -> kernel sees (C, tHW)
                pl.BlockSpec((None, C, thw), lambda n, p: (n, 0, p)),
                pl.BlockSpec((C, C), lambda n, p: (0, 0)),   # w1 (whole, resident)
                pl.BlockSpec((C, C), lambda n, p: (0, 0)),   # w2 (whole, resident)
            ],
            out_specs=pl.BlockSpec((None, C, thw), lambda n, p: (n, 0, p)),
        ),
        compiler_params=pltpu.CompilerParams(
            dimension_semantics=("parallel", "parallel")),
    )(x3, w1m, w2m)

    return out3.reshape(N, C, H, W)   # free reshape back to NCHW


def _reference(x_nchw, w1, w2):
    """Pure-JAX reference matching the PyTorch forward."""
    w1m = w1[:, :, 0, 0]
    w2m = w2[:, :, 0, 0]
    first = jnp.einsum("nchw,oc->nohw", x_nchw, w1m)
    first_relu = jnp.maximum(first, 0.0)
    second = jnp.einsum("nchw,oc->nohw", first_relu, w2m)
    return x_nchw * jax.nn.sigmoid(second)


if __name__ == "__main__":
    key = jax.random.PRNGKey(0)
    kx, k1, k2 = jax.random.split(key, 3)

    N, C, H, W = 2, 4, 16, 16
    x = jax.random.normal(kx, (N, C, H, W), dtype=jnp.float32)

    # Deterministic synthetic conv weights, shapes match nn.Conv2d(C, C, 1, bias=False)
    w1 = jax.random.normal(k1, (C, C, 1, 1), dtype=jnp.float32) * 0.5
    w2 = jax.random.normal(k2, (C, C, 1, 1), dtype=jnp.float32) * 0.5

    out = efficient_pixel_attention(x, w1, w2)
    out = jax.block_until_ready(out)

    ref = _reference(x, w1, w2)
    assert out.shape == (N, C, H, W)
    assert jnp.allclose(out, ref, atol=1e-5, rtol=1e-5), (
        float(jnp.max(jnp.abs(out - ref))))

    print("KERNEL_OK")
</pallas_src>

<mosaic_0001>
module attributes {stable_mosaic.version = 11 : i64} {
  func.func @_epa_kernel(%arg0: i32, %arg1: i32, %arg2: memref<1x4x256xf32, #tpu.memory_space<vmem>>, %arg3: memref<4x4xf32, #tpu.memory_space<vmem>>, %arg4: memref<4x4xf32, #tpu.memory_space<vmem>>, %arg5: memref<1x4x256xf32, #tpu.memory_space<vmem>>) attributes {dimension_semantics = [#tpu.dimension_semantics<parallel>, #tpu.dimension_semantics<parallel>], iteration_bounds = array<i64: 2, 1>, scalar_prefetch = 0 : i64, scratch_operands = 0 : i64, tpu.core_type = #tpu.core_type<tc>, window_params = [{transform_indices = @transform_0, window_bounds = array<i64: 1, 4, 256>}, {pipeline_mode = #tpu.pipeline_mode<synchronous>, transform_indices = @transform_1, window_bounds = array<i64: 4, 4>}, {pipeline_mode = #tpu.pipeline_mode<synchronous>, transform_indices = @transform_2, window_bounds = array<i64: 4, 4>}, {transform_indices = @transform_3, window_bounds = array<i64: 1, 4, 256>}]} {
    %c0 = arith.constant 0 : index
    %c0_0 = arith.constant 0 : index
    %c0_1 = arith.constant 0 : index
    %0 = vector.load %arg2[%c0, %c0_0, %c0_1] : memref<1x4x256xf32, #tpu.memory_space<vmem>>, vector<1x4x256xf32>
    %1 = vector.shape_cast %0 : vector<1x4x256xf32> to vector<4x256xf32>
    %c0_2 = arith.constant 0 : index
    %c0_3 = arith.constant 0 : index
    %2 = vector.load %arg3[%c0_2, %c0_3] : memref<4x4xf32, #tpu.memory_space<vmem>>, vector<4x4xf32>
    %cst = arith.constant dense<0.000000e+00> : vector<4x256xf32>
    %3 = tpu.matmul %2, %1, %cst {dimension_numbers = #tpu.dot_dimension_numbers<[1], [0], [0], [1], [0, 0, 1, 1], [], []>} : vector<4x4xf32>, vector<4x256xf32>, vector<4x256xf32> -> vector<4x256xf32>
    %cst_4 = arith.constant 0.000000e+00 : f32
    %4 = vector.broadcast %cst_4 : f32 to vector<4x256xf32>
    %5 = arith.maximumf %3, %4 : vector<4x256xf32>
    %c0_5 = arith.constant 0 : index
    %c0_6 = arith.constant 0 : index
    %6 = vector.load %arg4[%c0_5, %c0_6] : memref<4x4xf32, #tpu.memory_space<vmem>>, vector<4x4xf32>
    %cst_7 = arith.constant dense<0.000000e+00> : vector<4x256xf32>
    %7 = tpu.matmul %6, %5, %cst_7 {dimension_numbers = #tpu.dot_dimension_numbers<[1], [0], [0], [1], [0, 0, 1, 1], [], []>} : vector<4x4xf32>, vector<4x256xf32>, vector<4x256xf32> -> vector<4x256xf32>
    %8 = arith.negf %7 : vector<4x256xf32>
    %9 = math.exp %8 : vector<4x256xf32>
    %cst_8 = arith.constant 1.000000e+00 : f32
    %10 = vector.broadcast %cst_8 : f32 to vector<4x256xf32>
    %11 = arith.addf %10, %9 : vector<4x256xf32>
    %12 = arith.divf %10, %11 : vector<4x256xf32>
    %13 = arith.mulf %1, %12 : vector<4x256xf32>
    %c0_9 = arith.constant 0 : index
    %c0_10 = arith.constant 0 : index
    %c0_11 = arith.constant 0 : index
    %14 = vector.load %arg5[%c0_9, %c0_10, %c0_11] : memref<1x4x256xf32, #tpu.memory_space<vmem>>, vector<1x4x256xf32>
    %15 = vector.shape_cast %14 : vector<1x4x256xf32> to vector<4x256xf32>
    %16 = vector.shape_cast %13 : vector<4x256xf32> to vector<1x4x256xf32>
    tpu.vector_store %arg5[%c0_9, %c0_10, %c0_11], %16 {strides = array<i32>} : memref<1x4x256xf32, #tpu.memory_space<vmem>>, vector<1x4x256xf32>,
    return
  }
  func.func @transform_0(%arg0: i32, %arg1: i32) -> (i32, i32, i32) {
    %c0_i32 = arith.constant 0 : i32
    %c0_i32_0 = arith.constant 0 : i32
    return %arg0, %c0_i32, %arg1 : i32, i32, i32
  }
  func.func @transform_1(%arg0: i32, %arg1: i32) -> (i32, i32) {
    %c0_i32 = arith.constant 0 : i32
    %c0_i32_0 = arith.constant 0 : i32
    %c0_i32_1 = arith.constant 0 : i32
    return %c0_i32, %c0_i32_0 : i32, i32
  }
  func.func @transform_2(%arg0: i32, %arg1: i32) -> (i32, i32) {
    %c0_i32 = arith.constant 0 : i32
    %c0_i32_0 = arith.constant 0 : i32
    %c0_i32_1 = arith.constant 0 : i32
    return %c0_i32, %c0_i32_0 : i32, i32
  }
  func.func @transform_3(%arg0: i32, %arg1: i32) -> (i32, i32, i32) {
    %c0_i32 = arith.constant 0 : i32
    %c0_i32_0 = arith.constant 0 : i32
    return %arg0, %c0_i32, %arg1 : i32, i32, i32
  }
}

</mosaic_0001>

<llo_original>
// kernel: tpu_custom_call.1
$region0: #{tpu_custom_call.1}
  #allocation0 [shape = 'u32[]', space=smem, size = 0x4, offset = 0x4, fixed_abs, tag = 'smem constant byte address 0x4 - core index']
  #allocation1 [shape = 'u32[144,128]{1,0:T(1,128)}', space=vmem, size = 0x12000, scoped, tag = 'internal scratch']
  %s0 = inlined_call_operand.hbm [shape: f32[2,4,256], index: 0, kind: input, shape index: {}]
  %s1 = inlined_call_operand.hbm [shape: f32[4,4], index: 1, kind: input, shape index: {}]
  %s2 = inlined_call_operand.hbm [shape: f32[4,4], index: 2, kind: input, shape index: {}]
  %s3 = inlined_call_operand.hbm [shape: f32[2,4,256], index: 3, kind: output, shape index: {}]
  %s4 = sld [smem:[#allocation0]]
  $region57: #{tpu_custom_call.1} parent=0
    _
  %s6 = ssub.s32 1, %s4
  %s7 = scalar_select 0, %s6, %s4
  $region1: #{tpu_custom_call.1} parent=0
    #allocation2 [shape = 'u8[8192]{0}', space=vmem, size = 0x2000, scoped, tag = 'input window, operand 0']
    #allocation3 [shape = 's32[2]{0}', space=sflag, size = 0x8, scoped, tag = 'scoped memory for tpu_custom_call.1']
    #allocation4 [shape = 's32[2]{0}', space=sflag, size = 0x8, scoped, tag = 'scoped memory for tpu_custom_call.1']
    #allocation5 [shape = 'u8[2048]{0}', space=vmem, size = 0x800, scoped, tag = 'input window, operand 1, single buffered']
    #allocation6 [shape = 's32[1]{0}', space=sflag, size = 0x4, scoped, tag = 'scoped memory for tpu_custom_call.1']
    #allocation7 [shape = 'u8[2048]{0}', space=vmem, size = 0x800, scoped, tag = 'input window, operand 2, single buffered']
    #allocation8 [shape = 'u8[8192]{0}', space=vmem, size = 0x2000, scoped, tag = 'output window, operand 0']
    %8 = vsyncpa [#allocation3], 0
    %s9 = scalar_lea.sflag [#allocation3], 1
    %10 = vsyncpa %s9, 0
    %11 = vsyncpa [#allocation6], 0
    %12 = vsyncpa [#allocation4], 0
    %s13 = scalar_lea.sflag [#allocation4], 1
    %14 = vsyncpa %s13, 0
    loop: start=0, step=1, limit=4
    $region2: #{tpu_custom_call.1} parent=1 // loop_pre_header
      _
    $region3: #{tpu_custom_call.1} parent=1 // loop_header
      %s16 = sphi 0, %s20
      %p17 = scmp.ge.s32.totalorder %s16, 4
      %s23 = sphi 0, %s35
      %s24 = sphi 0, %s31
      %s25 = sphi 0, %s23
      %s26 = sphi 0, %s24
      %s27 = sphi 0, %s25
      %s28 = sphi 0, %s26
      %s40 = sphi 0, %s42
      %s43 = sphi 0, %s40
      %s44 = sphi 0, %s43
      %s60 = sphi 0, %s44
      %s64 = sphi 0, %s64
      %s66 = sphi 0, %s64
      %s67 = sphi 0, %s66
      %s81 = sphi 0, %s67
      %s85 = sphi 0, %s85
      %s87 = sphi 0, %s85
      %s88 = sphi 0, %s87
      %s102 = sphi 0, %s88
      %s110 = sphi 0, %s112
      %s113 = sphi 0, %s110
      %s114 = sphi 0, %s113
      %s130 = sphi 0, %s114
    $region4: #{tpu_custom_call.1} parent=1 // loop_header_branch
      %19 = sbr.rel (%p17) target = $region8
    $region5: #{tpu_custom_call.1} parent=1 // loop_body
      %s21 = ssub.s32 %s16, 1
      %s22 = ssub.s32 %s16, 2
      %s29 = sadd.s32 1, %s24
      %p30 = scmp.ge.s32.totalorder %s29, 1
      %s31 = scalar_select %p30, 0, %s29
      %s32 = sadd.s32 1, %s23
      %s33 = scalar_select %p30, %s32, %s23
      %p34 = scmp.ge.s32.totalorder %s33, 2
      %s35 = scalar_select %p34, 0, %s33
      %s36 = ssub.s32 %s23, %s35
      %s37 = ssub.s32 %s24, %s31
      %s38 = sor.u32 %s36, %s37
      %p39 = scmp.eq.s32.totalorder %s38, 0
      %s41 = sadd.s32 %s40, 1
      %s42 = scalar_select %p39, %s40, %s41
      %p45 = pneg %p39
      %p46 = scmp.eq.s32.totalorder %s16, 1
      %p47 = por %p45, %p46
      %p48 = scmp.ne.s32.totalorder %s40, %s43
      %p49 = scmp.eq.s32.totalorder %s16, 0
      %p50 = por %p48, %p49
      %p51 = scmp.ne.s32.totalorder %s40, %s43
      %p52 = scmp.eq.s32.totalorder %s21, 1
      %p53 = por %p51, %p52
      %p54 = scmp.ne.s32.totalorder %s43, %s44
      %p55 = scmp.eq.s32.totalorder %s21, 0
      %p56 = por %p54, %p55
      %p57 = scmp.ne.s32.totalorder %s43, %s44
      %p58 = scmp.eq.s32.totalorder %s22, 1
      %p59 = por %p57, %p58
      %p61 = scmp.ne.s32.totalorder %s44, %s60
      %p62 = scmp.eq.s32.totalorder %s22, 0
      %p63 = por %p61, %p62
      %s65 = sadd.s32 %s64, 1
      %p68 = scmp.eq.s32.totalorder %s16, 1
      %p69 = scmp.ne.s32.totalorder %s64, %s66
      %p70 = scmp.eq.s32.totalorder %s16, 0
      %p71 = por %p69, %p70
      %p72 = scmp.ne.s32.totalorder %s64, %s66
      %p73 = scmp.eq.s32.totalorder %s21, 1
      %p74 = por %p72, %p73
      %p75 = scmp.ne.s32.totalorder %s66, %s67
      %p76 = scmp.eq.s32.totalorder %s21, 0
      %p77 = por %p75, %p76
      %p78 = scmp.ne.s32.totalorder %s66, %s67
      %p79 = scmp.eq.s32.totalorder %s22, 1
      %p80 = por %p78, %p79
      %p82 = scmp.ne.s32.totalorder %s67, %s81
      %p83 = scmp.eq.s32.totalorder %s22, 0
      %p84 = por %p82, %p83
      %s86 = sadd.s32 %s85, 1
      %p89 = scmp.eq.s32.totalorder %s16, 1
      %p90 = scmp.ne.s32.totalorder %s85, %s87
      %p91 = scmp.eq.s32.totalorder %s16, 0
      %p92 = por %p90, %p91
      %p93 = scmp.ne.s32.totalorder %s85, %s87
      %p94 = scmp.eq.s32.totalorder %s21, 1
      %p95 = por %p93, %p94
      %p96 = scmp.ne.s32.totalorder %s87, %s88
      %p97 = scmp.eq.s32.totalorder %s21, 0
      %p98 = por %p96, %p97
      %p99 = scmp.ne.s32.totalorder %s87, %s88
      %p100 = scmp.eq.s32.totalorder %s22, 1
      %p101 = por %p99, %p100
      %p103 = scmp.ne.s32.totalorder %s88, %s102
      %p104 = scmp.eq.s32.totalorder %s22, 0
      %p105 = por %p103, %p104
      %s106 = ssub.s32 %s23, %s35
      %s107 = ssub.s32 %s24, %s31
      %s108 = sor.u32 %s106, %s107
      %p109 = scmp.eq.s32.totalorder %s108, 0
      %s111 = sadd.s32 %s110, 1
      %s112 = scalar_select %p109, %s110, %s111
      %p115 = pneg %p109
      %p116 = scmp.eq.s32.totalorder %s16, 1
      %p117 = por %p115, %p116
      %p118 = scmp.ne.s32.totalorder %s110, %s113
      %p119 = scmp.eq.s32.totalorder %s16, 0
      %p120 = por %p118, %p119
      %p121 = scmp.ne.s32.totalorder %s110, %s113
      %p122 = scmp.eq.s32.totalorder %s21, 1
      %p123 = por %p121, %p122
      %p124 = scmp.ne.s32.totalorder %s113, %s114
      %p125 = scmp.eq.s32.totalorder %s21, 0
      %p126 = por %p124, %p125
      %p127 = scmp.ne.s32.totalorder %s113, %s114
      %p128 = scmp.eq.s32.totalorder %s22, 1
      %p129 = por %p127, %p128
      %p131 = scmp.ne.s32.totalorder %s114, %s130
      %p132 = scmp.eq.s32.totalorder %s22, 0
      %p133 = por %p131, %p132
      %p134 = scmp.le.s32.totalorder 1, %s16
      %p135 = scmp.lt.s32.totalorder %s16, 3
      %p136 = pnand %p134, %p135
      %p137 = pneg %p136
      // Predicated region
      $region9: #{tpu_custom_call.1} parent=5 // pred_check
        _
      $region10: #{tpu_custom_call.1} parent=5 // pred_check_branch
        %139 = sbr.rel (%p136) target = $region12
      $region11: #{tpu_custom_call.1} parent=5 // pred_region
        %s140 = ssub.s32 %s16, 1
        // Predicated region
        $region13: #{tpu_custom_call.1} parent=11 // pred_check
          %p141 = pneg %p77
        $region14: #{tpu_custom_call.1} parent=11 // pred_check_branch
          %143 = sbr.rel (%p141) target = $region16
        $region15: #{tpu_custom_call.1} parent=11 // pred_region
          %s145 = ssub.s32 64, 64
          %146 = vsyncadd [#allocation6], %s145
          %s148 = sshll.u32 [#allocation5], 4
          %s149 = int_to_ptr.vmem [resolvable:$true] %s148
          %151 = dma.hbm_to_vmem [thread:$0]  %s1, 64, %s149, [#allocation6]
        $region16: #{tpu_custom_call.1} parent=11 // pred_fallthru
          _
        // Predicated region
        $region17: #{tpu_custom_call.1} parent=11 // pred_check
          %p152 = pneg %p98
        $region18: #{tpu_custom_call.1} parent=11 // pred_check_branch
          %154 = sbr.rel (%p152) target = $region20
        $region19: #{tpu_custom_call.1} parent=11 // pred_region
          %s156 = ssub.s32 64, 64
          %157 = vsyncadd [#allocation6], %s156
          %s159 = sshll.u32 [#allocation7], 4
          %s160 = int_to_ptr.vmem [resolvable:$true] %s159
          %162 = dma.hbm_to_vmem [thread:$0]  %s2, 64, %s160, [#allocation6]
        $region20: #{tpu_custom_call.1} parent=11 // pred_fallthru
          _
      $region12: #{tpu_custom_call.1} parent=5 // pred_fallthru
        _
      %p163 = scmp.lt.s32.totalorder %s16, 2
      // Predicated region
      $region21: #{tpu_custom_call.1} parent=5 // pred_check
        %p164 = pneg %p163
      $region22: #{tpu_custom_call.1} parent=5 // pred_check_branch
        %166 = sbr.rel (%p164) target = $region24
      $region23: #{tpu_custom_call.1} parent=5 // pred_region
        // Predicated region
        $region25: #{tpu_custom_call.1} parent=23 // pred_check
          %p167 = pneg %p50
        $region26: #{tpu_custom_call.1} parent=23 // pred_check_branch
          %169 = sbr.rel (%p167) target = $region28
        $region27: #{tpu_custom_call.1} parent=23 // pred_region
          %s170 = sand.u32 %s40, 1
          %s171 = scalar_lea.sflag [#allocation3], %s170
          %s172 = sand.u32 %s40, 1
          %s173 = smul.addr %s172, 8
          %s174 = scalar_lea.vmem [#allocation2], %s173
          %s175 = smul.u32 2, %s24
          %s177 = ssub.s32 128, 128
          %178 = vsyncadd %s171, %s177
          %s179 = smul.addr %s23, 2
          %s180 = sadd.s32 %s175, %s179
          %s181 = smul.addr %s180, 64
          %s182 = scalar_lea.hbm %s0, %s181
          %s184 = sshll.u32 %s174, 4
          %s185 = int_to_ptr.vmem [resolvable:$true] %s184
          %187 = dma.hbm_to_vmem [thread:$0]  %s182, 128, %s185, %s171
        $region28: #{tpu_custom_call.1} parent=23 // pred_fallthru
          _
      $region24: #{tpu_custom_call.1} parent=5 // pred_fallthru
        _
      %p188 = scmp.le.s32.totalorder 1, %s16
      %p189 = scmp.lt.s32.totalorder %s16, 3
      %p190 = pnand %p188, %p189
      %p191 = pneg %p190
      // Predicated region
      $region29: #{tpu_custom_call.1} parent=5 // pred_check
        _
      $region30: #{tpu_custom_call.1} parent=5 // pred_check_branch
        %193 = sbr.rel (%p190) target = $region32
      $region31: #{tpu_custom_call.1} parent=5 // pred_region
        %s194 = ssub.s32 %s16, 1
        %s195 = sand.u32 %s43, 1
        %s196 = scalar_lea.sflag [#allocation3], %s195
        %s197 = sand.u32 %s43, 1
        %s198 = smul.addr %s197, 8
        %s199 = scalar_lea.vmem [#allocation2], %s198
        // Predicated region
        $region33: #{tpu_custom_call.1} parent=31 // pred_check
          %p200 = pneg %p56
        $region34: #{tpu_custom_call.1} parent=31 // pred_check_branch
          %202 = sbr.rel (%p200) target = $region36
        $region35: #{tpu_custom_call.1} parent=31 // pred_region
          %203 = dma.done %s196, 128
        $region36: #{tpu_custom_call.1} parent=31 // pred_fallthru
          _
        // Predicated region
        $region37: #{tpu_custom_call.1} parent=31 // pred_check
          %p204 = pneg %p77
        $region38: #{tpu_custom_call.1} parent=31 // pred_check_branch
          %206 = sbr.rel (%p204) target = $region40
        $region39: #{tpu_custom_call.1} parent=31 // pred_region
          %207 = dma.done [#allocation6], 64
        $region40: #{tpu_custom_call.1} parent=31 // pred_fallthru
          _
        // Predicated region
        $region41: #{tpu_custom_call.1} parent=31 // pred_check
          %p208 = pneg %p98
        $region42: #{tpu_custom_call.1} parent=31 // pred_check_branch
          %210 = sbr.rel (%p208) target = $region44
        $region43: #{tpu_custom_call.1} parent=31 // pred_region
          %211 = dma.done [#allocation6], 64
        $region44: #{tpu_custom_call.1} parent=31 // pred_fallthru
          _
        %s212 = sand.u32 %s43, 1
        %s213 = scalar_lea.sflag [#allocation3], %s212
        %s214 = sand.u32 %s43, 1
        %s215 = smul.addr %s214, 8
        %s216 = scalar_lea.vmem [#allocation2], %s215
        %p217 = pneg %p56
        %p218 = pneg %p53
        %p219 = pneg %p77
        %p220 = pneg %p74
        %p221 = pneg %p98
        %p222 = pneg %p95
        %p223 = pneg %p126
        %p224 = pneg %p123
        %s225 = sand.u32 %s113, 1
        %s226 = scalar_lea.sflag [#allocation4], %s225
        %s227 = sand.u32 %s113, 1
        %s228 = smul.addr %s227, 8
        %s229 = scalar_lea.vmem [#allocation8], %s228
        %s230 = smul.u32 2, %s26
        %s231 = smul.u32 2, %s26
        %v232 = vld [vmem:[%s199] sm:$0xff]
        %v233 = vld [vmem:[#allocation5] sm:$0xf]
        %v235 = vcombine.high %v232, %v232
        %vm236 = vcmask 31744
        %v238 = vsel %vm236, %v233, 0
        %vm240 = vcmask 1043456
        %v241 = vsel %vm240, %v232, 0
        %v243 = vsel %vm240, %v235, 0
        %245 = vmatprep.subr.mxu0 0.0
        %246 = vmatpush1.msra.mxu0 0.0
        %247 = vmatprep.subr.mxu0 0.0
        %248 = vmatpush1.msra.mxu0 0.0
        %249 = vmatprep.subr.mxu0 0.0
        %250 = vmatpush1.msra.mxu0 0.0
        %251 = vmatprep.subr.mxu0 0.0
        %252 = vmatpush1.msra.mxu0 0.0
        %253 = vmatprep.subr.mxu0 0.0
        %254 = vmatpush1.msra.mxu0 0.0
        %255 = vmatprep.subr.mxu0 0.0
        %256 = vmatpush1.msra.mxu0 0.0
        %257 = vmatprep.subr.mxu0 0.0
        %258 = vmatpush1.msra.mxu0 0.0
        %259 = vmatprep.subr.mxu0 0.0
        %260 = vmatpush1.msra.mxu0 0.0
        %261 = vmatprep.subr.mxu0 0.0
        %262 = vmatpush1.msra.mxu0 0.0
        %263 = vmatprep.subr.mxu0 0.0
        %264 = vmatpush1.msra.mxu0 0.0
        %265 = vmatprep.subr.mxu0 0.0
        %266 = vmatpush1.msra.mxu0 0.0
        %267 = vmatprep.subr.mxu0 0.0
        %268 = vmatpush1.msra.mxu0 0.0
        %269 = vmatprep.subr.mxu0 0.0
        %270 = vmatpush1.msra.mxu0 0.0
        %271 = vmatprep.subr.mxu0 0.0
        %272 = vmatpush1.msra.mxu0 0.0
        %273 = vmatprep.subr.mxu0 0.0
        %274 = vmatpush1.msra.mxu0 0.0
        %275 = vmatprep.subr.mxu0 %v243
        %276 = vmatpush1.msra.mxu0 %v241
        %277 = vmatprep.subr.mxu0 0.0
        %278 = vmatpush2.msra.mxu0 0.0
        %279 = vmatprep.subr.mxu0 0.0
        %280 = vmatpush2.msra.mxu0 0.0
        %281 = vmatprep.subr.mxu0 0.0
        %282 = vmatpush2.msra.mxu0 0.0
        %283 = vmatprep.subr.mxu0 0.0
        %284 = vmatpush2.msra.mxu0 0.0
        %285 = vmatprep.subr.mxu0 0.0
        %286 = vmatpush2.msra.mxu0 0.0
        %287 = vmatprep.subr.mxu0 0.0
        %288 = vmatpush2.msra.mxu0 0.0
        %289 = vmatprep.subr.mxu0 0.0
        %290 = vmatpush2.msra.mxu0 0.0
        %291 = vmatprep.subr.mxu0 0.0
        %292 = vmatpush2.msra.mxu0 0.0
        %293 = vmatprep.subr.mxu0 0.0
        %294 = vmatpush2.msra.mxu0 0.0
        %295 = vmatprep.subr.mxu0 0.0
        %296 = vmatpush2.msra.mxu0 0.0
        %297 = vmatprep.subr.mxu0 0.0
        %298 = vmatpush2.msra.mxu0 0.0
        %299 = vmatprep.subr.mxu0 0.0
        %300 = vmatpush2.msra.mxu0 0.0
        %301 = vmatprep.subr.mxu0 0.0
        %302 = vmatpush2.msra.mxu0 0.0
        %303 = vmatprep.subr.mxu0 0.0
        %304 = vmatpush2.msra.mxu0 0.0
        %305 = vmatprep.subr.mxu0 0.0
        %306 = vmatpush2.msra.mxu0 0.0
        %307 = vmatprep.subr.mxu0 0.0
        %308 = vmatpush2.msra.mxu0 0.0
        %309 = vmatprep.mubr.f32.mxu0 0.0
        %310 = vmatmul.mubr.f32.gmra.mxu0 %v238
        %v311 = vpop.f32.mrf.mxu0
        %v312 = vadd.f32 0.0, %v311
        %v313 = vpop.f32.mrf.mxu0
        %v314 = vadd.f32 0.0, %v313
        %315 = vdwg.mxu0
        %v316 = vmax.f32 %v312, 0.0
        %v317 = vmax.f32 %v314, 0.0
        %v318 = vld [vmem:[#allocation7] sm:$0xf]
        %v320 = vsel %vm236, %v318, 0
        %v323 = vsel %vm240, %v316, 0
        %v326 = vsel %vm240, %v317, 0
        %328 = vmatprep.subr.mxu0 0.0
        %329 = vmatpush1.msra.mxu0 0.0
        %330 = vmatprep.subr.mxu0 0.0
        %331 = vmatpush1.msra.mxu0 0.0
        %332 = vmatprep.subr.mxu0 0.0
        %333 = vmatpush1.msra.mxu0 0.0
        %334 = vmatprep.subr.mxu0 0.0
        %335 = vmatpush1.msra.mxu0 0.0
        %336 = vmatprep.subr.mxu0 0.0
        %337 = vmatpush1.msra.mxu0 0.0
        %338 = vmatprep.subr.mxu0 0.0
        %339 = vmatpush1.msra.mxu0 0.0
        %340 = vmatprep.subr.mxu0 0.0
        %341 = vmatpush1.msra.mxu0 0.0
        %342 = vmatprep.subr.mxu0 0.0
        %343 = vmatpush1.msra.mxu0 0.0
        %344 = vmatprep.subr.mxu0 0.0
        %345 = vmatpush1.msra.mxu0 0.0
        %346 = vmatprep.subr.mxu0 0.0
        %347 = vmatpush1.msra.mxu0 0.0
        %348 = vmatprep.subr.mxu0 0.0
        %349 = vmatpush1.msra.mxu0 0.0
        %350 = vmatprep.subr.mxu0 0.0
        %351 = vmatpush1.msra.mxu0 0.0
        %352 = vmatprep.subr.mxu0 0.0
        %353 = vmatpush1.msra.mxu0 0.0
        %354 = vmatprep.subr.mxu0 0.0
        %355 = vmatpush1.msra.mxu0 0.0
        %356 = vmatprep.subr.mxu0 0.0
        %357 = vmatpush1.msra.mxu0 0.0
        %358 = vmatprep.subr.mxu0 %v326
        %359 = vmatpush1.msra.mxu0 %v323
        %360 = vmatprep.subr.mxu0 0.0
        %361 = vmatpush2.msra.mxu0 0.0
        %362 = vmatprep.subr.mxu0 0.0
        %363 = vmatpush2.msra.mxu0 0.0
        %364 = vmatprep.subr.mxu0 0.0
        %365 = vmatpush2.msra.mxu0 0.0
        %366 = vmatprep.subr.mxu0 0.0
        %367 = vmatpush2.msra.mxu0 0.0
        %368 = vmatprep.subr.mxu0 0.0
        %369 = vmatpush2.msra.mxu0 0.0
        %370 = vmatprep.subr.mxu0 0.0
        %371 = vmatpush2.msra.mxu0 0.0
        %372 = vmatprep.subr.mxu0 0.0
        %373 = vmatpush2.msra.mxu0 0.0
        %374 = vmatprep.subr.mxu0 0.0
        %375 = vmatpush2.msra.mxu0 0.0
        %376 = vmatprep.subr.mxu0 0.0
        %377 = vmatpush2.msra.mxu0 0.0
        %378 = vmatprep.subr.mxu0 0.0
        %379 = vmatpush2.msra.mxu0 0.0
        %380 = vmatprep.subr.mxu0 0.0
        %381 = vmatpush2.msra.mxu0 0.0
        %382 = vmatprep.subr.mxu0 0.0
        %383 = vmatpush2.msra.mxu0 0.0
        %384 = vmatprep.subr.mxu0 0.0
        %385 = vmatpush2.msra.mxu0 0.0
        %386 = vmatprep.subr.mxu0 0.0
        %387 = vmatpush2.msra.mxu0 0.0
        %388 = vmatprep.subr.mxu0 0.0
        %389 = vmatpush2.msra.mxu0 0.0
        %390 = vmatprep.subr.mxu0 0.0
        %391 = vmatpush2.msra.mxu0 0.0
        %392 = vmatprep.mubr.f32.mxu0 0.0
        %393 = vmatmul.mubr.f32.gmra.mxu0 %v320
        %v394 = vpop.f32.mrf.mxu0
        %v395 = vadd.f32 0.0, %v394
        %v396 = vpop.f32.mrf.mxu0
        %v397 = vadd.f32 0.0, %v396
        %398 = vdwg.mxu0
        %v399 = vxor.u32 %v395, 2147483648
        %v400 = vxor.u32 %v397, 2147483648
        %v401 = vmul.f32 %v399, 1.442695
        %v402 = vpow.pop %v401
        %v403 = vmul.f32 %v400, 1.442695
        %v404 = vpow.pop %v403
        %v405 = vadd.f32 %v402, 1.0
        %v406 = vadd.f32 %v404, 1.0
        %v407 = vrcp.pop %v405
        %v408 = vmul.f32 1.0, %v407
        %v409 = vrcp.pop %v406
        %v410 = vmul.f32 1.0, %v409
        %v413 = vcombine.low %v408, %v410
        %v415 = vmul.f32 %v232, %v413
        %416 = vst [vmem:[%s229] sm:$0xff] %v415
        %s417 = sand.u32 %s113, 1
        %s418 = scalar_lea.sflag [#allocation4], %s417
        %s419 = sand.u32 %s113, 1
        %s420 = smul.addr %s419, 8
        %s421 = scalar_lea.vmem [#allocation8], %s420
        // Predicated region
        $region45: #{tpu_custom_call.1} parent=31 // pred_check
          %p422 = pneg %p123
        $region46: #{tpu_custom_call.1} parent=31 // pred_check_branch
          %424 = sbr.rel (%p422) target = $region48
        $region47: #{tpu_custom_call.1} parent=31 // pred_region
          %s425 = smul.u32 2, %s26
          %s427 = ssub.s32 128, 128
          %428 = vsyncadd %s418, %s427
          %s429 = smul.addr %s25, 2
          %s430 = sadd.s32 %s425, %s429
          %s431 = smul.addr %s430, 64
          %s432 = scalar_lea.hbm %s3, %s431
          %s434 = sshll.u32 %s421, 4
          %s435 = int_to_ptr.vmem [resolvable:$true] %s434
          %437 = dma.vmem_to_hbm [thread:$0]  %s435, 128, %s432, %s418
        $region48: #{tpu_custom_call.1} parent=31 // pred_fallthru
          _
      $region32: #{tpu_custom_call.1} parent=5 // pred_fallthru
        _
      %p438 = scmp.le.s32.totalorder 2, %s16
      // Predicated region
      $region49: #{tpu_custom_call.1} parent=5 // pred_check
        %p439 = pneg %p438
      $region50: #{tpu_custom_call.1} parent=5 // pred_check_branch
        %441 = sbr.rel (%p439) target = $region52
      $region51: #{tpu_custom_call.1} parent=5 // pred_region
        %s442 = ssub.s32 %s16, 2
        // Predicated region
        $region53: #{tpu_custom_call.1} parent=51 // pred_check
          %p443 = pneg %p129
        $region54: #{tpu_custom_call.1} parent=51 // pred_check_branch
          %445 = sbr.rel (%p443) target = $region56
        $region55: #{tpu_custom_call.1} parent=51 // pred_region
          %s446 = sand.u32 %s114, 1
          %s447 = scalar_lea.sflag [#allocation4], %s446
          %s448 = sand.u32 %s114, 1
          %s449 = smul.addr %s448, 8
          %s450 = scalar_lea.vmem [#allocation8], %s449
          %451 = dma.done %s447, 128
        $region56: #{tpu_custom_call.1} parent=51 // pred_fallthru
          _
      $region52: #{tpu_custom_call.1} parent=5 // pred_fallthru
        _
    $region6: #{tpu_custom_call.1} parent=1 // loop_footer
      %s20 = sadd.s32 1, %s16
    $region7: #{tpu_custom_call.1} parent=1 // loop_footer_branch
      %15 = sbr.rel target = $region3
    $region8: #{tpu_custom_call.1} parent=1 // loop_exit
      _
    %452 = vsyncpa [#allocation3], 1
    %s453 = scalar_lea.sflag [#allocation3], 1
    %454 = vsyncpa %s453, 1
    %455 = vsyncpa [#allocation6], 1
    %456 = vsyncpa [#allocation4], 1
    %s457 = scalar_lea.sflag [#allocation4], 1
    %458 = vsyncpa %s457, 1

</llo_original>
